<compile_context>
chip_gen: v7x
topology: tpu7x:2x2x1
jax: 0.10.0
libtpu: 0.0.40
codegen_flags: <defaults>
</compile_context>

<pallas_src>
import jax
import jax.numpy as jnp
from jax.experimental import pallas as pl
from jax.experimental.pallas import tpu as pltpu


def _round_up(n: int, m: int) -> int:
    return ((n + m - 1) // m) * m


def _num_tensorcores() -> int:
    """2 on dual-TensorCore chips (v7x), else 1 (v5e/v6e)."""
    try:
        kind = jax.devices()[0].device_kind.lower()
    except Exception:
        return 1
    return 2 if "v7" in kind else 1


def _vmem_capacity_bytes() -> int:
    try:
        info = pltpu.get_tpu_info()
        cap = getattr(info, "vmem_capacity_bytes", None)
        if cap:
            return int(cap)
    except Exception:
        pass
    return 64 * 1024 * 1024  # conservative default (v7x per-TC VMEM)


def _plan_tiles(r: int, s: int, itemsize: int, num_cores: int, vmem_cap: int):
    """Choose (tr, lane_dense).

    lane_dense=True  -> per-step output block is (tr//128, 128), tr % 1024 == 0
    lane_dense=False -> per-step output block is (tr, 1)
    """
    # VMEM footprint of one input-tile row (lanes pad to 128) -- plan against
    # the padded footprint so small S (e.g. 7x7=49) doesn't blow the budget.
    row_vmem = _round_up(s, 128) * itemsize
    # Per-input-buffer budget: large contiguous DMAs, but double buffering +
    # output + headroom must fit even v7x's 64 MiB per-TC VMEM.
    per_buf = min(8 * 1024 * 1024, vmem_cap // 6)
    rows_fit = max(8, (per_buf // max(1, row_vmem)) // 8 * 8)

    if rows_fit >= r:
        # Whole problem fits in one tile.
        if num_cores > 1 and r >= 8 * 1024:
            # Dual-TC chip: split into >=4 steps/core so both cores issue DMAs;
            # TR stays a multiple of 1024 so output blocks are (8k, 128).
            tr = max(1024, ((r // (4 * num_cores)) // 1024) * 1024)
            if tr < r:
                return tr, True
        # Single-TC chip or small problem: one step, zero extra step overhead.
        return r, False

    # Bandwidth-bound bulk path: TR multiple of 1024 -> lane-dense output.
    if rows_fit >= 1024:
        return (rows_fit // 1024) * 1024, True
    # S is enormous (tile < 1024 rows): output traffic is negligible vs input,
    # keep the simple (TR, 1) output.
    return rows_fit, False


def _row_sum_kernel(x_ref, o_ref):
    # x_ref: (TR, S) rows.  o_ref: (TR//128, 128) lane-dense sums, or (TR, 1).
    # dtype=f32 keeps the accumulation in f32 without materializing a full
    # f32 copy of a bf16 tile.
    sums = jnp.sum(x_ref[...], axis=-1, keepdims=True, dtype=jnp.float32)  # (TR, 1)
    o_ref[...] = sums.reshape(o_ref.shape)


def _row_sums(x_rows):
    """x_rows: (R, S) -> (R,) f32 per-row sums (bandwidth-bound Pallas kernel)."""
    r, s = x_rows.shape
    itemsize = x_rows.dtype.itemsize
    num_cores = _num_tensorcores()
    vmem_cap = _vmem_capacity_bytes()
    tr, lane_dense = _plan_tiles(r, s, itemsize, num_cores, vmem_cap)
    num_steps = pl.cdiv(r, tr)

    if lane_dense:
        out_shape = jax.ShapeDtypeStruct((num_steps * (tr // 128), 128), jnp.float32)
        out_spec = pl.BlockSpec((tr // 128, 128), lambda i: (i, 0))
        out_tile_vmem = (tr // 128) * 128 * 4
    else:
        out_shape = jax.ShapeDtypeStruct((num_steps * tr, 1), jnp.float32)
        out_spec = pl.BlockSpec((tr, 1), lambda i: (i, 0))
        out_tile_vmem = _round_up(tr, 8) * 128 * 4  # (TR, 1) pads lanes to 128

    in_tile_vmem = _round_up(tr, 8) * _round_up(s, 128) * itemsize
    # Double-buffered input + output + margin, clamped to physical VMEM.
    vmem_limit = min(
        vmem_cap,
        max(32 * 1024 * 1024, 2 * in_tile_vmem + 2 * out_tile_vmem + 4 * 1024 * 1024),
    )

    if num_cores > 1 and num_steps > 1 and hasattr(pltpu, "CORE_PARALLEL"):
        dim_sem = (pltpu.CORE_PARALLEL,)
    else:
        dim_sem = ("parallel",)

    sums = pl.pallas_call(
        _row_sum_kernel,
        out_shape=out_shape,
        grid=(num_steps,),
        in_specs=[pl.BlockSpec((tr, s), lambda i: (i, 0))],
        out_specs=out_spec,
        compiler_params=pltpu.CompilerParams(
            dimension_semantics=dim_sem,
            vmem_limit_bytes=int(vmem_limit),
        ),
        cost_estimate=pl.CostEstimate(
            flops=int(r) * int(s),
            transcendentals=0,
            bytes_accessed=int(r) * int(s) * int(itemsize) + int(r) * 4,
        ),
    )(x_rows)

    # Row-major flatten preserves global row order for both output layouts.
    # Rows >= r (ragged tail of the last block) hold unspecified sums and are
    # sliced away here -- they must never feed anything else.
    return sums.reshape(-1)[:r]


def squeeze_forward(x, gamma):
    """x: (d, b, h, w1, w2), gamma: (h,) -> (d, b, h) in x.dtype.

    Equivalent to: rearrange -> AdaptiveAvgPool2d((1,1)) -> Flatten ->
    LayerScaler(gamma) -> rearrange back.
    """
    d, b, h, w1, w2 = x.shape
    s = w1 * w2
    r = d * b * h

    # Rows on the sublane axis (dense regardless of hidden_dim), spatial on lanes.
    x_rows = x.reshape(r, s)
    sums = _row_sums(x_rows)                               # (r,) f32

    # Tiny XLA epilogue: mean = sum / S, then LayerScaler gamma -- all in f32,
    # gamma never enters the kernel's per-step DMA stream.
    scale = gamma.astype(jnp.float32) * (1.0 / float(s))   # (h,)
    out = sums.reshape(d, b, h) * scale[None, None, :]
    return out.astype(x.dtype)


if __name__ == "__main__":
    # Small shapes consistent with the forward: depth=3, batch=2, hidden=4, 16x16 spatial.
    depth, batch, hidden, w = 3, 2, 4, 16
    init_scale = 1.0

    key = jax.random.PRNGKey(0)
    x = jax.random.normal(key, (depth, batch, hidden, w, w), dtype=jnp.float32)

    # Deterministic parameter init matching LayerScaler(hidden_dim, init_scale).
    gamma = init_scale * jnp.ones((hidden,), dtype=jnp.float32)

    out = jax.block_until_ready(squeeze_forward(x, gamma))

    # Sanity check against the pure-JAX reference.
    ref = jnp.mean(x, axis=(-1, -2)) * gamma[None, None, :]
    assert out.shape == (depth, batch, hidden)
    assert jnp.allclose(out, ref, atol=1e-5, rtol=1e-5)

    print("KERNEL_OK")
</pallas_src>

<mosaic_0001>
module attributes {stable_mosaic.version = 11 : i64} {
  func.func @_row_sum_kernel(%arg0: i32, %arg1: memref<24x256xf32, #tpu.memory_space<vmem>>, %arg2: memref<24x1xf32, #tpu.memory_space<vmem>>) attributes {dimension_semantics = [#tpu.dimension_semantics<parallel>], iteration_bounds = array<i64: 1>, scalar_prefetch = 0 : i64, scratch_operands = 0 : i64, tpu.core_type = #tpu.core_type<tc>, window_params = [{transform_indices = @transform_0, window_bounds = array<i64: 24, 256>}, {transform_indices = @transform_1, window_bounds = array<i64: 24, 1>}]} {
    %c0 = arith.constant 0 : index
    %c0_0 = arith.constant 0 : index
    %0 = vector.load %arg1[%c0, %c0_0] : memref<24x256xf32, #tpu.memory_space<vmem>>, vector<24x256xf32>
    %cst = arith.constant dense<0.000000e+00> : vector<24xf32>
    %1 = vector.multi_reduction <add>, %0, %cst [1] : vector<24x256xf32> to vector<24xf32>
    %2 = vector.shape_cast %1 : vector<24xf32> to vector<24x1xf32>
    %c0_1 = arith.constant 0 : index
    %c0_2 = arith.constant 0 : index
    %3 = vector.load %arg2[%c0_1, %c0_2] : memref<24x1xf32, #tpu.memory_space<vmem>>, vector<24x1xf32>
    tpu.vector_store %arg2[%c0_1, %c0_2], %2 {strides = array<i32>} : memref<24x1xf32, #tpu.memory_space<vmem>>, vector<24x1xf32>,
    return
  }
  func.func @transform_0(%arg0: i32) -> (i32, i32) {
    %c0_i32 = arith.constant 0 : i32
    %c0_i32_0 = arith.constant 0 : i32
    return %arg0, %c0_i32 : i32, i32
  }
  func.func @transform_1(%arg0: i32) -> (i32, i32) {
    %c0_i32 = arith.constant 0 : i32
    %c0_i32_0 = arith.constant 0 : i32
    return %arg0, %c0_i32 : i32, i32
  }
}

</mosaic_0001>

<llo_original>
// kernel: tpu_custom_call.1
$region0: #{tpu_custom_call.1}
  #allocation0 [shape = 'u32[]', space=smem, size = 0x4, offset = 0x4, fixed_abs, tag = 'smem constant byte address 0x4 - core index']
  #allocation1 [shape = 'u32[144,128]{1,0:T(1,128)}', space=vmem, size = 0x12000, scoped, tag = 'internal scratch']
  %s0 = inlined_call_operand.hbm [shape: f32[24,256], index: 0, kind: input, shape index: {}]
  %s1 = inlined_call_operand.vmem [shape: f32[24,1], index: 1, kind: output, shape index: {}]
  %s2 = sld [smem:[#allocation0]]
  $region18: #{tpu_custom_call.1} parent=0
    _
  %s4 = ssub.s32 1, %s2
  %s5 = scalar_select 0, %s4, %s2
  $region1: #{tpu_custom_call.1} parent=0
    #allocation2 [shape = 'u8[24576]{0}', space=vmem, size = 0x6000, scoped, tag = 'input window, operand 0, single buffered']
    #allocation3 [shape = 's32[1]{0}', space=sflag, size = 0x4, scoped, tag = 'scoped memory for tpu_custom_call.1']
    %6 = vsyncpa [#allocation3], 0
    // Predicated region
    $region2: #{tpu_custom_call.1} parent=1 // pred_check
      _
    $region3: #{tpu_custom_call.1} parent=1 // pred_check_branch
      %8 = sbr.rel (0) target = $region5
    $region4: #{tpu_custom_call.1} parent=1 // pred_region
      %s10 = ssub.s32 768, 768
      %11 = vsyncadd [#allocation3], %s10
      %s12 = sshll.u32 [#allocation2], 4
      %s13 = int_to_ptr.vmem [resolvable:$true] %s12
      %18 = dma.hbm_to_vmem [thread:$0]  %s0, 768, %s13, [#allocation3], 256, 256, 16
    $region5: #{tpu_custom_call.1} parent=1 // pred_fallthru
      _
    // Predicated region
    $region6: #{tpu_custom_call.1} parent=1 // pred_check
      _
    $region7: #{tpu_custom_call.1} parent=1 // pred_check_branch
      %20 = sbr.rel (0) target = $region9
    $region8: #{tpu_custom_call.1} parent=1 // pred_region
      %21 = dma.done [#allocation3], 768
    $region9: #{tpu_custom_call.1} parent=1 // pred_fallthru
      _
    %v22 = vld [vmem:[#allocation2] sm:$0xff]
    %v23 = vld [vmem:[#allocation2 + $0x8] sm:$0xff]
    %v24 = vld [vmem:[#allocation2 + $0x10] sm:$0xff]
    %v25 = vld [vmem:[#allocation2 + $0x18] sm:$0xff]
    %v26 = vld [vmem:[#allocation2 + $0x20] sm:$0xff]
    %v27 = vld [vmem:[#allocation2 + $0x28] sm:$0xff]
    %v28 = vadd.f32 %v22, %v23
    %29 = vadd.xlane.f32.xlu0 %v28
    %v30 = vpop.xlane.xlu0 %29
    %v31 = vadd.f32 %v24, %v25
    %32 = vadd.xlane.f32.xlu0 %v31
    %v33 = vpop.xlane.xlu0 %32
    %v34 = vadd.f32 %v26, %v27
    %35 = vadd.xlane.f32.xlu0 %v34
    %v36 = vpop.xlane.xlu0 %35
    %vm37 = vcmask 7168
    %38 = vst.msk [vmem:[%s1] sm:$0xff] %vm37, %v30
    %39 = vst.msk [vmem:[%s1 + $0x8] sm:$0xff] %vm37, %v33
    %40 = vst.msk [vmem:[%s1 + $0x10] sm:$0xff] %vm37, %v36
    // Predicated region
    $region10: #{tpu_custom_call.1} parent=1 // pred_check
      _
    $region11: #{tpu_custom_call.1} parent=1 // pred_check_branch
      %42 = sbr.rel (0) target = $region13
    $region12: #{tpu_custom_call.1} parent=1 // pred_region
      _
    $region13: #{tpu_custom_call.1} parent=1 // pred_fallthru
      _
    // Predicated region
    $region14: #{tpu_custom_call.1} parent=1 // pred_check
      _
    $region15: #{tpu_custom_call.1} parent=1 // pred_check_branch
      %44 = sbr.rel (0) target = $region17
    $region16: #{tpu_custom_call.1} parent=1 // pred_region
      _
    $region17: #{tpu_custom_call.1} parent=1 // pred_fallthru
      _
    %45 = vsyncpa [#allocation3], 1

</llo_original>
